<compile_context>
chip_gen: v5e
topology: v5e:2x2
jax: 0.10.0
libtpu: 0.0.40
codegen_flags: <defaults>
</compile_context>

<pallas_src>
import functools

import jax
import jax.numpy as jnp
from jax import lax
from jax.experimental import pallas as pl
from jax.experimental.pallas import tpu as pltpu


LAYER_CFG = [(3, 64, 1), (4, 128, 2), (6, 256, 2), (3, 512, 2)]  # ResNet-50


def _round_up(x, m):
    return (x + m - 1) // m * m


def _pick_tile(p, cap):
    """Largest multiple-of-128 divisor of p that is <= cap (p itself if p <= cap)."""
    if p <= cap:
        return p
    d = p // 128
    for m in range(d, 0, -1):
        if d % m == 0 and m * 128 <= cap:
            return m * 128
    return 128


# --------------------------------------------------------------------------
# Pallas kernels
# --------------------------------------------------------------------------
def _matmul_kernel(x_ref, w_ref, b_ref, *rest, relu, has_res):
    """acc += x @ w (bf16 on MXU, f32 acc); last K step: o = act(acc + b [+ res])."""
    if has_res:
        r_ref, o_ref, acc_ref = rest
    else:
        o_ref, acc_ref = rest
    k = pl.program_id(2)

    @pl.when(k == 0)
    def _init():
        acc_ref[...] = jnp.zeros_like(acc_ref)

    acc_ref[...] += jnp.dot(x_ref[...], w_ref[...],
                            preferred_element_type=jnp.float32)

    @pl.when(k == pl.num_programs(2) - 1)
    def _finalize():
        y = acc_ref[...] + b_ref[...]
        if has_res:
            y = y + r_ref[...]
        if relu:
            y = jnp.maximum(y, 0.0)
        o_ref[...] = y.astype(o_ref.dtype)


def _maxpool_kernel(x_ref, o_ref):
    # x block: (9 taps, TM rows, C lanes) -> elementwise max over the tap axis.
    o_ref[...] = jnp.max(x_ref[...], axis=0)


def _avgpool_kernel(x_ref, o_ref, *, inv_n):
    # x block: (B, H*W, TC) -> mean over the spatial axis.
    o_ref[...] = jnp.sum(x_ref[...], axis=1) * inv_n


# --------------------------------------------------------------------------
# Fused matmul wrapper (conv + BN bias + residual + ReLU, and the linear heads)
# --------------------------------------------------------------------------
@functools.partial(jax.jit, static_argnames=("relu",))
def fused_matmul(x, w, b, res=None, *, relu):
    """y = act(x @ w + b (+ res)).  w is pre-padded (Kp, Np) bf16, b is (1, N) f32."""
    M, K = x.shape
    Kp, Np = w.shape
    N = b.shape[1]

    TM = min(256, _round_up(M, 8))      # 256-row MXU-friendly tiles, bounded VMEM
    Mp = _round_up(M, TM)
    TK = _pick_tile(Kp, 640)
    TN = _pick_tile(Np, 1024)           # Np<=2048 -> at most 2 N tiles (x re-read <=2x)

    xp = jnp.pad(x, ((0, Mp - M), (0, Kp - K))).astype(jnp.bfloat16)
    bp = jnp.pad(b, ((0, 0), (0, Np - N)))

    has_res = res is not None
    in_specs = [
        pl.BlockSpec((TM, TK), lambda i, j, k: (i, k)),   # activations / patches
        pl.BlockSpec((TK, TN), lambda i, j, k: (k, j)),   # weights (BN scale folded in)
        pl.BlockSpec((1, TN), lambda i, j, k: (0, j)),    # bias
    ]
    operands = [xp, w, bp]
    if has_res:
        rp = jnp.pad(res, ((0, Mp - M), (0, Np - N)))
        in_specs.append(pl.BlockSpec((TM, TN), lambda i, j, k: (i, j)))
        operands.append(rp)

    out = pl.pallas_call(
        functools.partial(_matmul_kernel, relu=relu, has_res=has_res),
        out_shape=jax.ShapeDtypeStruct((Mp, Np), jnp.float32),
        grid_spec=pltpu.PrefetchScalarGridSpec(
            num_scalar_prefetch=0,
            grid=(Mp // TM, Np // TN, Kp // TK),          # reduction axis (K) innermost
            in_specs=in_specs,
            out_specs=pl.BlockSpec((TM, TN), lambda i, j, k: (i, j)),
            scratch_shapes=[pltpu.VMEM((TM, TN), jnp.float32)],
        ),
        compiler_params=pltpu.CompilerParams(
            dimension_semantics=("parallel", "parallel", "arbitrary"),
            vmem_limit_bytes=32 * 1024 * 1024,
        ),
    )(*operands)
    return out[:M, :N]


# --------------------------------------------------------------------------
# Convolution / pooling wrappers
# --------------------------------------------------------------------------
def _extract_patches(x, k, stride, pad):
    """(B,H,W,C) NHWC -> (B*Ho*Wo, k*k*C) with tap order (dy, dx, cin)."""
    B, H, W, C = x.shape
    xp = jnp.pad(x, ((0, 0), (pad, pad), (pad, pad), (0, 0)))
    Hp, Wp = H + 2 * pad, W + 2 * pad
    Ho = (Hp - k) // stride + 1
    Wo = (Wp - k) // stride + 1
    taps = [xp[:, dy:dy + (Ho - 1) * stride + 1:stride,
               dx:dx + (Wo - 1) * stride + 1:stride, :]
            for dy in range(k) for dx in range(k)]
    pat = jnp.concatenate(taps, axis=-1)
    return pat.reshape(B * Ho * Wo, k * k * C), Ho, Wo


# TODO(synk): 3x3 / 7x7 convs still materialize an im2col patch matrix in HBM
# (9x / 49x activation bytes); an in-kernel tap accumulation with halo DMA would
# remove that traffic but is not implemented here.
@functools.partial(jax.jit, static_argnames=("stride", "ksize", "pad", "relu"))
def conv_bn(x, p, res=None, *, stride, ksize, pad, relu):
    """conv (no bias, BN scale folded into w) + BN bias (+ residual) (+ ReLU)."""
    B, H, W, C = x.shape
    if ksize == 1 and stride == 1:
        patches, Ho, Wo = x.reshape(B * H * W, C), H, W
    else:
        patches, Ho, Wo = _extract_patches(x, ksize, stride, pad)
    cout = p["b"].shape[1]
    res_m = None if res is None else res.reshape(B * Ho * Wo, cout)
    y = fused_matmul(patches, p["w"], p["b"], res_m, relu=relu)
    return y.reshape(B, Ho, Wo, cout)


@jax.jit
def maxpool_3x3_s2_p1(x):
    B, H, W, C = x.shape
    xp = jnp.pad(x, ((0, 0), (1, 1), (1, 1), (0, 0)), constant_values=-jnp.inf)
    Ho = (H + 2 - 3) // 2 + 1
    Wo = (W + 2 - 3) // 2 + 1
    taps = [xp[:, dy:dy + (Ho - 1) * 2 + 1:2, dx:dx + (Wo - 1) * 2 + 1:2, :]
            for dy in range(3) for dx in range(3)]
    M = B * Ho * Wo
    stk = jnp.stack(taps, axis=0).reshape(9, M, C)  # taps leading -> no sublane padding

    # Fold rows into lanes so the last dim is 128-wide (lane-dense stores).
    fold = 1
    if C < 128 and 128 % C == 0 and M % (128 // C) == 0:
        fold = 128 // C
    Mf, Cf = M // fold, C * fold
    stk = stk.reshape(9, Mf, Cf)

    TM = min(512, _round_up(Mf, 8))
    Mfp = _round_up(Mf, TM)
    stk = jnp.pad(stk, ((0, 0), (0, Mfp - Mf), (0, 0)), constant_values=-jnp.inf)

    out = pl.pallas_call(
        _maxpool_kernel,
        out_shape=jax.ShapeDtypeStruct((Mfp, Cf), jnp.float32),
        grid_spec=pltpu.PrefetchScalarGridSpec(
            num_scalar_prefetch=0,
            grid=(Mfp // TM,),
            in_specs=[pl.BlockSpec((9, TM, Cf), lambda i: (0, i, 0))],
            out_specs=pl.BlockSpec((TM, Cf), lambda i: (i, 0)),
        ),
        compiler_params=pltpu.CompilerParams(dimension_semantics=("parallel",)),
    )(stk)
    return out[:Mf].reshape(B, Ho, Wo, C)


@jax.jit
def adaptive_avgpool_1x1(x):
    B, H, W, C = x.shape
    HW = H * W
    Cp = _round_up(C, 128)
    xr = jnp.pad(x.reshape(B, HW, C), ((0, 0), (0, 0), (0, Cp - C)))
    TC = 512 if Cp % 512 == 0 else Cp
    out = pl.pallas_call(
        functools.partial(_avgpool_kernel, inv_n=1.0 / HW),
        out_shape=jax.ShapeDtypeStruct((B, Cp), jnp.float32),
        grid_spec=pltpu.PrefetchScalarGridSpec(
            num_scalar_prefetch=0,
            grid=(Cp // TC,),
            in_specs=[pl.BlockSpec((B, HW, TC), lambda c: (0, 0, c))],
            out_specs=pl.BlockSpec((B, TC), lambda c: (0, c)),
        ),
        compiler_params=pltpu.CompilerParams(dimension_semantics=("parallel",)),
    )(xr)
    return out[:, :C]


# --------------------------------------------------------------------------
# Parameter initialization (deterministic, synthetic; BN folded, pre-padded bf16)
# --------------------------------------------------------------------------
def _init_conv_bn(key, cin, cout, k):
    kw, kg, kb, km, kv = jax.random.split(key, 5)
    fan_in = cin * k * k
    w = jax.random.normal(kw, (k * k * cin, cout), jnp.float32) * (2.0 / fan_in) ** 0.5
    gamma = 1.0 + 0.1 * jax.random.normal(kg, (cout,), jnp.float32)
    beta = 0.1 * jax.random.normal(kb, (cout,), jnp.float32)
    mean = 0.1 * jax.random.normal(km, (cout,), jnp.float32)
    var = 1.0 + 0.1 * jax.random.uniform(kv, (cout,), jnp.float32)
    scale = gamma * lax.rsqrt(var + 1e-5)      # inference BN folded into conv
    bias = beta - mean * scale
    w = w * scale[None, :]                     # fold BN scale into the weights
    K = k * k * cin
    Kp, Np = _round_up(K, 128), _round_up(cout, 128)
    wp = jnp.pad(w, ((0, Kp - K), (0, Np - cout))).astype(jnp.bfloat16)
    return {"w": wp, "b": bias.reshape(1, cout)}


def _init_linear(key, cin, cout):
    k1, k2 = jax.random.split(key)
    bound = 1.0 / (cin ** 0.5)
    w = jax.random.uniform(k1, (cin, cout), jnp.float32, -bound, bound)
    b = jax.random.uniform(k2, (cout,), jnp.float32, -bound, bound)
    return w, b


def init_params(key):
    keys = iter(jax.random.split(key, 128))
    params = {"stem": _init_conv_bn(next(keys), 3, 64, 7)}
    inplanes = 64
    layers = []
    for nblocks, planes, _stride in LAYER_CFG:
        blocks = []
        for bi in range(nblocks):
            blk = {
                "conv1": _init_conv_bn(next(keys), inplanes, planes, 1),
                "conv2": _init_conv_bn(next(keys), planes, planes, 3),
                "conv3": _init_conv_bn(next(keys), planes, planes * 4, 1),
            }
            if bi == 0:
                blk["down"] = _init_conv_bn(next(keys), inplanes, planes * 4, 1)
            blocks.append(blk)
            inplanes = planes * 4
        layers.append(blocks)
    params["layers"] = layers

    # Three classification heads fused into one pre-padded bf16 weight matrix.
    w0, b0 = _init_linear(next(keys), 2048, 5)
    w1, b1 = _init_linear(next(keys), 2048, 7)
    w2, b2 = _init_linear(next(keys), 2048, 45)
    wc = jnp.concatenate([w0, w1, w2], axis=1)            # (2048, 57)
    bc = jnp.concatenate([b0, b1, b2], axis=0)            # (57,)
    Np = _round_up(57, 128)
    params["heads"] = {"w": jnp.pad(wc, ((0, 0), (0, Np - 57))).astype(jnp.bfloat16),
                       "b": bc.reshape(1, 57)}
    return params


# --------------------------------------------------------------------------
# Forward pass (matches MultiHeadResNet50.forward semantics)
# --------------------------------------------------------------------------
def bottleneck(x, blk, stride):
    identity = x
    out = conv_bn(x, blk["conv1"], stride=1, ksize=1, pad=0, relu=True)
    out = conv_bn(out, blk["conv2"], stride=stride, ksize=3, pad=1, relu=True)
    if "down" in blk:
        identity = conv_bn(x, blk["down"], stride=stride, ksize=1, pad=0, relu=False)
    # relu(bn3(conv3(out)) + identity): residual add + ReLU fused into the matmul kernel.
    out = conv_bn(out, blk["conv3"], res=identity, stride=1, ksize=1, pad=0, relu=True)
    return out


def multihead_resnet50_forward(params, x_nchw):
    x = jnp.transpose(x_nchw, (0, 2, 3, 1))   # NCHW (PyTorch) -> NHWC (channels = lanes)
    x = conv_bn(x, params["stem"], stride=2, ksize=7, pad=3, relu=True)
    x = maxpool_3x3_s2_p1(x)
    for li, blocks in enumerate(params["layers"]):
        layer_stride = LAYER_CFG[li][2]
        for bi, blk in enumerate(blocks):
            x = bottleneck(x, blk, layer_stride if bi == 0 else 1)
    pooled = adaptive_avgpool_1x1(x)           # F.adaptive_avg_pool2d(x, 1).reshape(B, -1)
    logits = fused_matmul(pooled, params["heads"]["w"], params["heads"]["b"], relu=False)
    return logits[:, :5], logits[:, 5:12], logits[:, 12:57]


# TODO(synk): pretrained ImageNet weights from `pretrainedmodels` are not loaded;
# parameters are synthetic deterministic initializations with identical shapes.

if __name__ == "__main__":
    root = jax.random.PRNGKey(0)
    pkey, xkey = jax.random.split(root)
    params = init_params(pkey)
    # Small NCHW input with 3 channels; 64x64 keeps all 5 stride-2 stages valid
    # (final feature map is 2x2x2048).
    x = jax.random.normal(xkey, (2, 3, 64, 64), jnp.float32)

    l0, l1, l2 = multihead_resnet50_forward(params, x)
    (l0, l1, l2) = jax.block_until_ready((l0, l1, l2))

    assert l0.shape == (2, 5) and l1.shape == (2, 7) and l2.shape == (2, 45)
    assert bool(jnp.isfinite(l0).all() & jnp.isfinite(l1).all() & jnp.isfinite(l2).all())
    print("KERNEL_OK")
</pallas_src>

<mosaic_0001>
module attributes {stable_mosaic.version = 11 : i64} {
  func.func @_matmul_kernel(%arg0: i32, %arg1: i32, %arg2: i32, %arg3: memref<256x256xbf16, #tpu.memory_space<vmem>>, %arg4: memref<256x128xbf16, #tpu.memory_space<vmem>>, %arg5: memref<1x128xf32, #tpu.memory_space<vmem>>, %arg6: memref<256x128xf32, #tpu.memory_space<vmem>>, %arg7: memref<256x128xf32, #tpu.memory_space<vmem>>) attributes {dimension_semantics = [#tpu.dimension_semantics<parallel>, #tpu.dimension_semantics<parallel>, #tpu.dimension_semantics<arbitrary>], iteration_bounds = array<i64: 8, 1, 1>, scalar_prefetch = 0 : i64, scratch_operands = 1 : i64, tpu.core_type = #tpu.core_type<tc>, window_params = [{transform_indices = @transform_0, window_bounds = array<i64: 256, 256>}, {transform_indices = @transform_1, window_bounds = array<i64: 256, 128>}, {transform_indices = @transform_2, window_bounds = array<i64: 1, 128>}, {transform_indices = @transform_3, window_bounds = array<i64: 256, 128>}]} {
    %c0_i32 = arith.constant 0 : i32
    %0 = arith.cmpi eq, %arg2, %c0_i32 : i32
    %1 = arith.extui %0 : i1 to i32
    %c0_i32_0 = arith.constant 0 : i32
    %2 = arith.cmpi ne, %1, %c0_i32_0 : i32
    scf.if %2 {
      %cst_10 = arith.constant 0.000000e+00 : f32
      %12 = vector.broadcast %cst_10 : f32 to vector<256x128xf32>
      %c0_11 = arith.constant 0 : index
      %c0_12 = arith.constant 0 : index
      %13 = vector.load %arg7[%c0_11, %c0_12] : memref<256x128xf32, #tpu.memory_space<vmem>>, vector<256x128xf32>
      tpu.vector_store %arg7[%c0_11, %c0_12], %12 {strides = array<i32>} : memref<256x128xf32, #tpu.memory_space<vmem>>, vector<256x128xf32>,
    } else {
    }
    %c0 = arith.constant 0 : index
    %c0_1 = arith.constant 0 : index
    %3 = vector.load %arg7[%c0, %c0_1] : memref<256x128xf32, #tpu.memory_space<vmem>>, vector<256x128xf32>
    %c0_2 = arith.constant 0 : index
    %c0_3 = arith.constant 0 : index
    %4 = vector.load %arg3[%c0_2, %c0_3] : memref<256x256xbf16, #tpu.memory_space<vmem>>, vector<256x256xbf16>
    %c0_4 = arith.constant 0 : index
    %c0_5 = arith.constant 0 : index
    %5 = vector.load %arg4[%c0_4, %c0_5] : memref<256x128xbf16, #tpu.memory_space<vmem>>, vector<256x128xbf16>
    %cst = arith.constant dense<0.000000e+00> : vector<256x128xf32>
    %6 = tpu.matmul %4, %5, %cst {dimension_numbers = #tpu.dot_dimension_numbers<[1], [0], [0], [1], [0, 0, 1, 1], [], []>} : vector<256x256xbf16>, vector<256x128xbf16>, vector<256x128xf32> -> vector<256x128xf32>
    %7 = arith.addf %3, %6 : vector<256x128xf32>
    %c0_6 = arith.constant 0 : index
    %c0_7 = arith.constant 0 : index
    %8 = vector.load %arg7[%c0_6, %c0_7] : memref<256x128xf32, #tpu.memory_space<vmem>>, vector<256x128xf32>
    tpu.vector_store %arg7[%c0_6, %c0_7], %7 {strides = array<i32>} : memref<256x128xf32, #tpu.memory_space<vmem>>, vector<256x128xf32>,
    %c0_i32_8 = arith.constant 0 : i32
    %9 = arith.cmpi eq, %arg2, %c0_i32_8 : i32
    %10 = arith.extui %9 : i1 to i32
    %c0_i32_9 = arith.constant 0 : i32
    %11 = arith.cmpi ne, %10, %c0_i32_9 : i32
    scf.if %11 {
      %c0_10 = arith.constant 0 : index
      %c0_11 = arith.constant 0 : index
      %12 = vector.load %arg7[%c0_10, %c0_11] : memref<256x128xf32, #tpu.memory_space<vmem>>, vector<256x128xf32>
      %c0_12 = arith.constant 0 : index
      %c0_13 = arith.constant 0 : index
      %13 = vector.load %arg5[%c0_12, %c0_13] : memref<1x128xf32, #tpu.memory_space<vmem>>, vector<1x128xf32>
      %14 = vector.broadcast %13 : vector<1x128xf32> to vector<256x128xf32>
      %15 = arith.addf %12, %14 : vector<256x128xf32>
      %cst_14 = arith.constant 0.000000e+00 : f32
      %16 = vector.broadcast %cst_14 : f32 to vector<256x128xf32>
      %17 = arith.maximumf %15, %16 : vector<256x128xf32>
      %c0_15 = arith.constant 0 : index
      %c0_16 = arith.constant 0 : index
      %18 = vector.load %arg6[%c0_15, %c0_16] : memref<256x128xf32, #tpu.memory_space<vmem>>, vector<256x128xf32>
      tpu.vector_store %arg6[%c0_15, %c0_16], %17 {strides = array<i32>} : memref<256x128xf32, #tpu.memory_space<vmem>>, vector<256x128xf32>,
    } else {
    }
    return
  }
  func.func @transform_0(%arg0: i32, %arg1: i32, %arg2: i32) -> (i32, i32) {
    %c0_i32 = arith.constant 0 : i32
    return %arg0, %arg2 : i32, i32
  }
  func.func @transform_1(%arg0: i32, %arg1: i32, %arg2: i32) -> (i32, i32) {
    %c0_i32 = arith.constant 0 : i32
    return %arg2, %arg1 : i32, i32
  }
  func.func @transform_2(%arg0: i32, %arg1: i32, %arg2: i32) -> (i32, i32) {
    %c0_i32 = arith.constant 0 : i32
    %c0_i32_0 = arith.constant 0 : i32
    return %c0_i32, %arg1 : i32, i32
  }
  func.func @transform_3(%arg0: i32, %arg1: i32, %arg2: i32) -> (i32, i32) {
    %c0_i32 = arith.constant 0 : i32
    return %arg0, %arg1 : i32, i32
  }
}

</mosaic_0001>

<llo_original>
// kernel: fused_matmul.1
$region0: #{fused_matmul.1}
  #allocation0 [shape = 'u32[]', space=smem, size = 0x4, offset = 0x4, fixed_abs, tag = 'smem constant byte address 0x4 - core index']
  #allocation1 [shape = 'u32[72,128]{1,0:T(1,128)}', space=vmem, size = 0x9000, scoped, tag = 'internal scratch']
  #allocation2 [shape = 'f32[256,128]{1,0:T(8,128)}', space=vmem, size = 0x20000, scoped, tag = 'scratch operand']
  %s0 = inlined_call_operand.vmem [shape: bf16[2048,256], index: 0, kind: input, shape index: {}]
  %s1 = inlined_call_operand.vmem [shape: bf16[256,128], index: 1, kind: input, shape index: {}]
  %s2 = inlined_call_operand.vmem [shape: f32[1,128], index: 2, kind: input, shape index: {}]
  %s3 = inlined_call_operand.vmem [shape: f32[2048,128], index: 3, kind: output, shape index: {}]
  %s4 = sld [smem:[#allocation0]]
  $region53: #{fused_matmul.1} parent=0
    _
  %s6 = ssub.s32 1, %s4
  %s7 = scalar_select 0, %s6, %s4
  loop: start=0, step=1, limit=10
  $region2: #{fused_matmul.1} parent=0 // loop_pre_header
    _
  $region3: #{fused_matmul.1} parent=0 // loop_header
    %s9 = sphi 0, %s13
    %p10 = scmp.ge.s32.totalorder %s9, 10
    %s16 = sphi 0, %s35
    %s17 = sphi 0, %s31
    %s18 = sphi 0, %s27
    %s19 = sphi 0, %s16
    %s20 = sphi 0, %s17
    %s21 = sphi 0, %s18
    %s22 = sphi 0, %s19
    %s23 = sphi 0, %s20
    %s24 = sphi 0, %s21
    %s40 = sphi 0, %s42
    %s43 = sphi 0, %s40
    %s44 = sphi 0, %s43
    %s60 = sphi 0, %s44
    %s68 = sphi 0, %s70
    %s71 = sphi 0, %s68
    %s72 = sphi 0, %s71
    %s88 = sphi 0, %s72
    %s94 = sphi 0, %s96
    %s97 = sphi 0, %s94
    %s98 = sphi 0, %s97
    %s114 = sphi 0, %s98
    %s122 = sphi 0, %s124
    %s125 = sphi 0, %s122
    %s126 = sphi 0, %s125
    %s142 = sphi 0, %s126
  $region4: #{fused_matmul.1} parent=0 // loop_header_branch
    %12 = sbr.rel (%p10) target = $region8
  $region5: #{fused_matmul.1} parent=0 // loop_body
    %s14 = ssub.s32 %s9, 1
    %s15 = ssub.s32 %s9, 2
    %s25 = sadd.s32 1, %s18
    %p26 = scmp.ge.s32.totalorder %s25, 1
    %s27 = scalar_select %p26, 0, %s25
    %s28 = sadd.s32 1, %s17
    %s29 = scalar_select %p26, %s28, %s17
    %p30 = scmp.ge.s32.totalorder %s29, 1
    %s31 = scalar_select %p30, 0, %s29
    %s32 = sadd.s32 1, %s16
    %s33 = scalar_select %p30, %s32, %s16
    %p34 = scmp.ge.s32.totalorder %s33, 8
    %s35 = scalar_select %p34, 0, %s33
    %s36 = ssub.s32 %s16, %s35
    %s37 = ssub.s32 %s18, %s27
    %s38 = sor.u32 %s36, %s37
    %p39 = scmp.eq.s32.totalorder %s38, 0
    %s41 = sadd.s32 %s40, 1
    %s42 = scalar_select %p39, %s40, %s41
    %p45 = pneg %p39
    %p46 = scmp.eq.s32.totalorder %s9, 7
    %p47 = por %p45, %p46
    %p48 = scmp.ne.s32.totalorder %s40, %s43
    %p49 = scmp.eq.s32.totalorder %s9, 0
    %p50 = por %p48, %p49
    %p51 = scmp.ne.s32.totalorder %s40, %s43
    %p52 = scmp.eq.s32.totalorder %s14, 7
    %p53 = por %p51, %p52
    %p54 = scmp.ne.s32.totalorder %s43, %s44
    %p55 = scmp.eq.s32.totalorder %s14, 0
    %p56 = por %p54, %p55
    %p57 = scmp.ne.s32.totalorder %s43, %s44
    %p58 = scmp.eq.s32.totalorder %s15, 7
    %p59 = por %p57, %p58
    %p61 = scmp.ne.s32.totalorder %s44, %s60
    %p62 = scmp.eq.s32.totalorder %s15, 0
    %p63 = por %p61, %p62
    %s64 = ssub.s32 %s18, %s27
    %s65 = ssub.s32 %s17, %s31
    %s66 = sor.u32 %s64, %s65
    %p67 = scmp.eq.s32.totalorder %s66, 0
    %s69 = sadd.s32 %s68, 1
    %s70 = scalar_select %p67, %s68, %s69
    %p73 = pneg %p67
    %p74 = scmp.eq.s32.totalorder %s9, 7
    %p75 = por %p73, %p74
    %p76 = scmp.ne.s32.totalorder %s68, %s71
    %p77 = scmp.eq.s32.totalorder %s9, 0
    %p78 = por %p76, %p77
    %p79 = scmp.ne.s32.totalorder %s68, %s71
    %p80 = scmp.eq.s32.totalorder %s14, 7
    %p81 = por %p79, %p80
    %p82 = scmp.ne.s32.totalorder %s71, %s72
    %p83 = scmp.eq.s32.totalorder %s14, 0
    %p84 = por %p82, %p83
    %p85 = scmp.ne.s32.totalorder %s71, %s72
    %p86 = scmp.eq.s32.totalorder %s15, 7
    %p87 = por %p85, %p86
    %p89 = scmp.ne.s32.totalorder %s72, %s88
    %p90 = scmp.eq.s32.totalorder %s15, 0
    %p91 = por %p89, %p90
    %s92 = ssub.s32 %s17, %s31
    %p93 = scmp.eq.s32.totalorder %s92, 0
    %s95 = sadd.s32 %s94, 1
    %s96 = scalar_select %p93, %s94, %s95
    %p99 = pneg %p93
    %p100 = scmp.eq.s32.totalorder %s9, 7
    %p101 = por %p99, %p100
    %p102 = scmp.ne.s32.totalorder %s94, %s97
    %p103 = scmp.eq.s32.totalorder %s9, 0
    %p104 = por %p102, %p103
    %p105 = scmp.ne.s32.totalorder %s94, %s97
    %p106 = scmp.eq.s32.totalorder %s14, 7
    %p107 = por %p105, %p106
    %p108 = scmp.ne.s32.totalorder %s97, %s98
    %p109 = scmp.eq.s32.totalorder %s14, 0
    %p110 = por %p108, %p109
    %p111 = scmp.ne.s32.totalorder %s97, %s98
    %p112 = scmp.eq.s32.totalorder %s15, 7
    %p113 = por %p111, %p112
    %p115 = scmp.ne.s32.totalorder %s98, %s114
    %p116 = scmp.eq.s32.totalorder %s15, 0
    %p117 = por %p115, %p116
    %s118 = ssub.s32 %s16, %s35
    %s119 = ssub.s32 %s17, %s31
    %s120 = sor.u32 %s118, %s119
    %p121 = scmp.eq.s32.totalorder %s120, 0
    %s123 = sadd.s32 %s122, 1
    %s124 = scalar_select %p121, %s122, %s123
    %p127 = pneg %p121
    %p128 = scmp.eq.s32.totalorder %s9, 7
    %p129 = por %p127, %p128
    %p130 = scmp.ne.s32.totalorder %s122, %s125
    %p131 = scmp.eq.s32.totalorder %s9, 0
    %p132 = por %p130, %p131
    %p133 = scmp.ne.s32.totalorder %s122, %s125
    %p134 = scmp.eq.s32.totalorder %s14, 7
    %p135 = por %p133, %p134
    %p136 = scmp.ne.s32.totalorder %s125, %s126
    %p137 = scmp.eq.s32.totalorder %s14, 0
    %p138 = por %p136, %p137
    %p139 = scmp.ne.s32.totalorder %s125, %s126
    %p140 = scmp.eq.s32.totalorder %s15, 7
    %p141 = por %p139, %p140
    %p143 = scmp.ne.s32.totalorder %s126, %s142
    %p144 = scmp.eq.s32.totalorder %s15, 0
    %p145 = por %p143, %p144
    %p146 = scmp.le.s32.totalorder 1, %s9
    %p147 = scmp.lt.s32.totalorder %s9, 9
    %p148 = pnand %p146, %p147
    %p149 = pneg %p148
    // Predicated region
    $region9: #{fused_matmul.1} parent=5 // pred_check
      _
    $region10: #{fused_matmul.1} parent=5 // pred_check_branch
      %151 = sbr.rel (%p148) target = $region12
    $region11: #{fused_matmul.1} parent=5 // pred_region
      %s152 = ssub.s32 %s9, 1
      // Predicated region
      $region13: #{fused_matmul.1} parent=11 // pred_check
        %p153 = pneg %p84
      $region14: #{fused_matmul.1} parent=11 // pred_check_branch
        %155 = sbr.rel (%p153) target = $region16
      $region15: #{fused_matmul.1} parent=11 // pred_region
        %s156 = smul.u32 32, %s21
        %p157 = scmp.lt.s32.totalorder %s156, 31
        %s158 = scalar_select %p157, %s156, 31
        %p159 = scmp.lt.s32.totalorder %s20, 0
        %s160 = scalar_select %p159, %s20, 0
        %s161 = sadd.s32 %s160, %s158
        %s162 = smul.addr %s161, 4
        %s163 = scalar_lea.vmem %s1, %s162
        %s164 = smul.u32 32, %s21
      $region16: #{fused_matmul.1} parent=11 // pred_fallthru
        _
      // Predicated region
      $region17: #{fused_matmul.1} parent=11 // pred_check
        %p165 = pneg %p110
      $region18: #{fused_matmul.1} parent=11 // pred_check_branch
        %167 = sbr.rel (%p165) target = $region20
      $region19: #{fused_matmul.1} parent=11 // pred_region
        %p168 = scmp.lt.s32.totalorder %s20, 0
        %s169 = scalar_select %p168, %s20, 0
        %s170 = scalar_lea.vmem %s2, %s169
      $region20: #{fused_matmul.1} parent=11 // pred_fallthru
        _
    $region12: #{fused_matmul.1} parent=5 // pred_fallthru
      _
    %p171 = scmp.lt.s32.totalorder %s9, 8
    // Predicated region
    $region21: #{fused_matmul.1} parent=5 // pred_check
      %p172 = pneg %p171
    $region22: #{fused_matmul.1} parent=5 // pred_check_branch
      %174 = sbr.rel (%p172) target = $region24
    $region23: #{fused_matmul.1} parent=5 // pred_region
      // Predicated region
      $region25: #{fused_matmul.1} parent=23 // pred_check
        %p175 = pneg %p50
      $region26: #{fused_matmul.1} parent=23 // pred_check_branch
        %177 = sbr.rel (%p175) target = $region28
      $region27: #{fused_matmul.1} parent=23 // pred_region
        %s178 = smul.u32 32, %s16
        %s179 = smul.u32 2, %s18
        %p180 = scmp.lt.s32.totalorder %s178, 255
        %s181 = scalar_select %p180, %s178, 255
        %p182 = scmp.lt.s32.totalorder %s179, 1
        %s183 = scalar_select %p182, %s179, 1
        %s184 = smul.addr %s181, 2
        %s185 = sadd.s32 %s183, %s184
        %s186 = smul.addr %s185, 4
        %s187 = scalar_lea.vmem %s0, %s186
        %s188 = smul.u32 32, %s16
        %s189 = smul.u32 2, %s18
      $region28: #{fused_matmul.1} parent=23 // pred_fallthru
        _
    $region24: #{fused_matmul.1} parent=5 // pred_fallthru
      _
    %p190 = scmp.le.s32.totalorder 1, %s9
    %p191 = scmp.lt.s32.totalorder %s9, 9
    %p192 = pnand %p190, %p191
    %p193 = pneg %p192
    // Predicated region
    $region29: #{fused_matmul.1} parent=5 // pred_check
      _
    $region30: #{fused_matmul.1} parent=5 // pred_check_branch
      %195 = sbr.rel (%p192) target = $region32
    $region31: #{fused_matmul.1} parent=5 // pred_region
      %s196 = ssub.s32 %s9, 1
      %s197 = smul.u32 32, %s19
      %s198 = smul.u32 2, %s21
      %p199 = scmp.lt.s32.totalorder %s197, 255
      %s200 = scalar_select %p199, %s197, 255
      %p201 = scmp.lt.s32.totalorder %s198, 1
      %s202 = scalar_select %p201, %s198, 1
      %s203 = smul.addr %s200, 2
      %s204 = sadd.s32 %s202, %s203
      %s205 = smul.addr %s204, 4
      %s206 = scalar_lea.vmem %s0, %s205
      %p207 = pneg %p56
      %p208 = pneg %p53
      %s209 = smul.u32 32, %s21
      %p210 = scmp.lt.s32.totalorder %s209, 31
      %s211 = scalar_select %p210, %s209, 31
      %p212 = scmp.lt.s32.totalorder %s20, 0
      %s213 = scalar_select %p212, %s20, 0
      %s214 = sadd.s32 %s213, %s211
      %s215 = smul.addr %s214, 4
      %s216 = scalar_lea.vmem %s1, %s215
      %p217 = pneg %p84
      %p218 = pneg %p81
      %p219 = scmp.lt.s32.totalorder %s20, 0
      %s220 = scalar_select %p219, %s20, 0
      %s221 = scalar_lea.vmem %s2, %s220
      %p222 = pneg %p110
      %p223 = pneg %p107
      %p224 = pneg %p138
      %p225 = pneg %p135
      %s226 = smul.u32 32, %s19
      %p227 = scmp.lt.s32.totalorder %s226, 255
      %s228 = scalar_select %p227, %s226, 255
      %p229 = scmp.lt.s32.totalorder %s20, 0
      %s230 = scalar_select %p229, %s20, 0
      %s231 = sadd.s32 %s230, %s228
      %s232 = smul.addr %s231, 8
      %s233 = scalar_lea.vmem %s3, %s232
      %s234 = smul.u32 32, %s19
      %s235 = smul.u32 2, %s21
      %p236 = scmp.lt.s32.totalorder %s234, 255
      %s237 = scalar_select %p236, %s234, 255
      %p238 = scmp.lt.s32.totalorder %s235, 1
      %s239 = scalar_select %p238, %s235, 1
      %s240 = smul.addr %s237, 2
      %s241 = sadd.s32 %s239, %s240
      %s242 = smul.addr %s241, 4
      %s243 = scalar_lea.vmem %s0, %s242
      %s244 = smul.u32 32, %s19
      %s245 = smul.u32 2, %s21
      %s246 = smul.u32 32, %s21
      %p247 = scmp.lt.s32.totalorder %s246, 31
      %s248 = scalar_select %p247, %s246, 31
      %p249 = scmp.lt.s32.totalorder %s20, 0
      %s250 = scalar_select %p249, %s20, 0
      %s251 = sadd.s32 %s250, %s248
      %s252 = smul.addr %s251, 4
      %s253 = scalar_lea.vmem %s1, %s252
      %s254 = smul.u32 32, %s21
      %p255 = scmp.lt.s32.totalorder %s20, 0
      %s256 = scalar_select %p255, %s20, 0
      %s257 = scalar_lea.vmem %s2, %s256
      %s258 = smul.u32 32, %s19
      %p259 = scmp.lt.s32.totalorder %s258, 255
      %s260 = scalar_select %p259, %s258, 255
      %p261 = scmp.lt.s32.totalorder %s20, 0
      %s262 = scalar_select %p261, %s20, 0
      %s263 = sadd.s32 %s262, %s260
      %s264 = smul.addr %s263, 8
      %s265 = scalar_lea.vmem %s3, %s264
      %s266 = smul.u32 32, %s19
      %p267 = scmp.eq.s32.totalorder %s21, 0
      // Predicated region
      $region33: #{fused_matmul.1} parent=31 // pred_check
        %p268 = pneg %p267
      $region34: #{fused_matmul.1} parent=31 // pred_check_branch
        %270 = sbr.rel (%p268) target = $region36
      $region35: #{fused_matmul.1} parent=31 // pred_region
        %271 = vst [vmem:[#allocation2] sm:$0xff] 0.0
        %272 = vst [vmem:[#allocation2 + $0x8] sm:$0xff] 0.0
        %273 = vst [vmem:[#allocation2 + $0x10] sm:$0xff] 0.0
        %274 = vst [vmem:[#allocation2 + $0x18] sm:$0xff] 0.0
        %275 = vst [vmem:[#allocation2 + $0x20] sm:$0xff] 0.0
        %276 = vst [vmem:[#allocation2 + $0x28] sm:$0xff] 0.0
        %277 = vst [vmem:[#allocation2 + $0x30] sm:$0xff] 0.0
        %278 = vst [vmem:[#allocation2 + $0x38] sm:$0xff] 0.0
        %279 = vst [vmem:[#allocation2 + $0x40] sm:$0xff] 0.0
        %280 = vst [vmem:[#allocation2 + $0x48] sm:$0xff] 0.0
        %281 = vst [vmem:[#allocation2 + $0x50] sm:$0xff] 0.0
        %282 = vst [vmem:[#allocation2 + $0x58] sm:$0xff] 0.0
        %283 = vst [vmem:[#allocation2 + $0x60] sm:$0xff] 0.0
        %284 = vst [vmem:[#allocation2 + $0x68] sm:$0xff] 0.0
        %285 = vst [vmem:[#allocation2 + $0x70] sm:$0xff] 0.0
        %286 = vst [vmem:[#allocation2 + $0x78] sm:$0xff] 0.0
        %287 = vst [vmem:[#allocation2 + $0x80] sm:$0xff] 0.0
        %288 = vst [vmem:[#allocation2 + $0x88] sm:$0xff] 0.0
        %289 = vst [vmem:[#allocation2 + $0x90] sm:$0xff] 0.0
        %290 = vst [vmem:[#allocation2 + $0x98] sm:$0xff] 0.0
        %291 = vst [vmem:[#allocation2 + $0xa0] sm:$0xff] 0.0
        %292 = vst [vmem:[#allocation2 + $0xa8] sm:$0xff] 0.0
        %293 = vst [vmem:[#allocation2 + $0xb0] sm:$0xff] 0.0
        %294 = vst [vmem:[#allocation2 + $0xb8] sm:$0xff] 0.0
        %295 = vst [vmem:[#allocation2 + $0xc0] sm:$0xff] 0.0
        %296 = vst [vmem:[#allocation2 + $0xc8] sm:$0xff] 0.0
        %297 = vst [vmem:[#allocation2 + $0xd0] sm:$0xff] 0.0
        %298 = vst [vmem:[#allocation2 + $0xd8] sm:$0xff] 0.0
        %299 = vst [vmem:[#allocation2 + $0xe0] sm:$0xff] 0.0
        %300 = vst [vmem:[#allocation2 + $0xe8] sm:$0xff] 0.0
        %301 = vst [vmem:[#allocation2 + $0xf0] sm:$0xff] 0.0
        %302 = vst [vmem:[#allocation2 + $0xf8] sm:$0xff] 0.0
      $region36: #{fused_matmul.1} parent=31 // pred_fallthru
        _
      %v303 = vld [vmem:[#allocation2] sm:$0xff]
      %v304 = vld [vmem:[#allocation2 + $0x8] sm:$0xff]
      %v305 = vld [vmem:[#allocation2 + $0x10] sm:$0xff]
      %v306 = vld [vmem:[#allocation2 + $0x18] sm:$0xff]
      %v307 = vld [vmem:[#allocation2 + $0x20] sm:$0xff]
      %v308 = vld [vmem:[#allocation2 + $0x28] sm:$0xff]
      %v309 = vld [vmem:[#allocation2 + $0x30] sm:$0xff]
      %v310 = vld [vmem:[#allocation2 + $0x38] sm:$0xff]
      %v311 = vld [vmem:[#allocation2 + $0x40] sm:$0xff]
      %v312 = vld [vmem:[#allocation2 + $0x48] sm:$0xff]
      %v313 = vld [vmem:[#allocation2 + $0x50] sm:$0xff]
      %v314 = vld [vmem:[#allocation2 + $0x58] sm:$0xff]
      %v315 = vld [vmem:[#allocation2 + $0x60] sm:$0xff]
      %v316 = vld [vmem:[#allocation2 + $0x68] sm:$0xff]
      %v317 = vld [vmem:[#allocation2 + $0x70] sm:$0xff]
      %v318 = vld [vmem:[#allocation2 + $0x78] sm:$0xff]
      %v319 = vld [vmem:[#allocation2 + $0x80] sm:$0xff]
      %v320 = vld [vmem:[#allocation2 + $0x88] sm:$0xff]
      %v321 = vld [vmem:[#allocation2 + $0x90] sm:$0xff]
      %v322 = vld [vmem:[#allocation2 + $0x98] sm:$0xff]
      %v323 = vld [vmem:[#allocation2 + $0xa0] sm:$0xff]
      %v324 = vld [vmem:[#allocation2 + $0xa8] sm:$0xff]
      %v325 = vld [vmem:[#allocation2 + $0xb0] sm:$0xff]
      %v326 = vld [vmem:[#allocation2 + $0xb8] sm:$0xff]
      %v327 = vld [vmem:[#allocation2 + $0xc0] sm:$0xff]
      %v328 = vld [vmem:[#allocation2 + $0xc8] sm:$0xff]
      %v329 = vld [vmem:[#allocation2 + $0xd0] sm:$0xff]
      %v330 = vld [vmem:[#allocation2 + $0xd8] sm:$0xff]
      %v331 = vld [vmem:[#allocation2 + $0xe0] sm:$0xff]
      %v332 = vld [vmem:[#allocation2 + $0xe8] sm:$0xff]
      %v333 = vld [vmem:[#allocation2 + $0xf0] sm:$0xff]
      %v334 = vld [vmem:[#allocation2 + $0xf8] sm:$0xff]
      %v335 = vld [vmem:[%s243] sm:$0xff]
      %v336 = vld [vmem:[%s243 + $0x8] sm:$0xff]
      %v337 = vld [vmem:[%s243 + $0x10] sm:$0xff]
      %v338 = vld [vmem:[%s243 + $0x18] sm:$0xff]
      %v339 = vld [vmem:[%s243 + $0x20] sm:$0xff]
      %v340 = vld [vmem:[%s243 + $0x28] sm:$0xff]
      %v341 = vld [vmem:[%s243 + $0x30] sm:$0xff]
      %v342 = vld [vmem:[%s243 + $0x38] sm:$0xff]
      %v343 = vld [vmem:[%s243 + $0x40] sm:$0xff]
      %v344 = vld [vmem:[%s243 + $0x48] sm:$0xff]
      %v345 = vld [vmem:[%s243 + $0x50] sm:$0xff]
      %v346 = vld [vmem:[%s243 + $0x58] sm:$0xff]
      %v347 = vld [vmem:[%s243 + $0x60] sm:$0xff]
      %v348 = vld [vmem:[%s243 + $0x68] sm:$0xff]
      %v349 = vld [vmem:[%s243 + $0x70] sm:$0xff]
      %v350 = vld [vmem:[%s243 + $0x78] sm:$0xff]
      %v351 = vld [vmem:[%s243 + $0x80] sm:$0xff]
      %v352 = vld [vmem:[%s243 + $0x88] sm:$0xff]
      %v353 = vld [vmem:[%s243 + $0x90] sm:$0xff]
      %v354 = vld [vmem:[%s243 + $0x98] sm:$0xff]
      %v355 = vld [vmem:[%s243 + $0xa0] sm:$0xff]
      %v356 = vld [vmem:[%s243 + $0xa8] sm:$0xff]
      %v357 = vld [vmem:[%s243 + $0xb0] sm:$0xff]
      %v358 = vld [vmem:[%s243 + $0xb8] sm:$0xff]
      %v359 = vld [vmem:[%s243 + $0xc0] sm:$0xff]
      %v360 = vld [vmem:[%s243 + $0xc8] sm:$0xff]
      %v361 = vld [vmem:[%s243 + $0xd0] sm:$0xff]
      %v362 = vld [vmem:[%s243 + $0xd8] sm:$0xff]
      %v363 = vld [vmem:[%s243 + $0xe0] sm:$0xff]
      %v364 = vld [vmem:[%s243 + $0xe8] sm:$0xff]
      %v365 = vld [vmem:[%s243 + $0xf0] sm:$0xff]
      %v366 = vld [vmem:[%s243 + $0xf8] sm:$0xff]
      %v367 = vld [vmem:[%s253] sm:$0xf]
      %v368 = vld [vmem:[%s253 + $0x4] sm:$0xf]
      %v369 = vld [vmem:[%s253 + $0x8] sm:$0xf]
      %v370 = vld [vmem:[%s253 + $0xc] sm:$0xf]
      %v371 = vld [vmem:[%s253 + $0x10] sm:$0xf]
      %v372 = vld [vmem:[%s253 + $0x14] sm:$0xf]
      %v373 = vld [vmem:[%s253 + $0x18] sm:$0xf]
      %v374 = vld [vmem:[%s253 + $0x1c] sm:$0xf]
      %v375 = vld [vmem:[%s253 + $0x20] sm:$0xf]
      %v376 = vld [vmem:[%s253 + $0x24] sm:$0xf]
      %v377 = vld [vmem:[%s253 + $0x28] sm:$0xf]
      %v378 = vld [vmem:[%s253 + $0x2c] sm:$0xf]
      %v379 = vld [vmem:[%s253 + $0x30] sm:$0xf]
      %v380 = vld [vmem:[%s253 + $0x34] sm:$0xf]
      %v381 = vld [vmem:[%s253 + $0x38] sm:$0xf]
      %v382 = vld [vmem:[%s253 + $0x3c] sm:$0xf]
      %v383 = vld [vmem:[%s253 + $0x40] sm:$0xf]
      %v384 = vld [vmem:[%s253 + $0x44] sm:$0xf]
      %v385 = vld [vmem:[%s253 + $0x48] sm:$0xf]
      %v386 = vld [vmem:[%s253 + $0x4c] sm:$0xf]
      %v387 = vld [vmem:[%s253 + $0x50] sm:$0xf]
      %v388 = vld [vmem:[%s253 + $0x54] sm:$0xf]
      %v389 = vld [vmem:[%s253 + $0x58] sm:$0xf]
      %v390 = vld [vmem:[%s253 + $0x5c] sm:$0xf]
      %v391 = vld [vmem:[%s253 + $0x60] sm:$0xf]
      %v392 = vld [vmem:[%s253 + $0x64] sm:$0xf]
      %v393 = vld [vmem:[%s253 + $0x68] sm:$0xf]
      %v394 = vld [vmem:[%s253 + $0x6c] sm:$0xf]
      %v395 = vld [vmem:[%s253 + $0x70] sm:$0xf]
      %v396 = vld [vmem:[%s253 + $0x74] sm:$0xf]
      %v397 = vld [vmem:[%s253 + $0x78] sm:$0xf]
      %v398 = vld [vmem:[%s253 + $0x7c] sm:$0xf]
      %v431 = vunpack.c.l.b16 %v335
      %v432 = vunpack.c.h.b16 %v335
      %v433 = vunpack.c.l.b16 %v336
      %v434 = vunpack.c.h.b16 %v336
      %v435 = vunpack.c.l.b16 %v337
      %v436 = vunpack.c.h.b16 %v337
      %v437 = vunpack.c.l.b16 %v338
      %v438 = vunpack.c.h.b16 %v338
      %v439 = vunpack.c.l.b16 %v339
      %v440 = vunpack.c.h.b16 %v339
      %v441 = vunpack.c.l.b16 %v340
      %v442 = vunpack.c.h.b16 %v340
      %v443 = vunpack.c.l.b16 %v341
      %v444 = vunpack.c.h.b16 %v341
      %v445 = vunpack.c.l.b16 %v342
      %v446 = vunpack.c.h.b16 %v342
      %v447 = vunpack.c.l.b16 %v343
      %v448 = vunpack.c.h.b16 %v343
      %v449 = vunpack.c.l.b16 %v344
      %v450 = vunpack.c.h.b16 %v344
      %v451 = vunpack.c.l.b16 %v345
      %v452 = vunpack.c.h.b16 %v345
      %v453 = vunpack.c.l.b16 %v346
      %v454 = vunpack.c.h.b16 %v346
      %v455 = vunpack.c.l.b16 %v347
      %v456 = vunpack.c.h.b16 %v347
      %v457 = vunpack.c.l.b16 %v348
      %v458 = vunpack.c.h.b16 %v348
      %v459 = vunpack.c.l.b16 %v349
      %v460 = vunpack.c.h.b16 %v349
      %v461 = vunpack.c.l.b16 %v350
      %v462 = vunpack.c.h.b16 %v350
      %v463 = vunpack.c.l.b16 %v351
      %v464 = vunpack.c.h.b16 %v351
      %v465 = vunpack.c.l.b16 %v352
      %v466 = vunpack.c.h.b16 %v352
      %v467 = vunpack.c.l.b16 %v353
      %v468 = vunpack.c.h.b16 %v353
      %v469 = vunpack.c.l.b16 %v354
      %v470 = vunpack.c.h.b16 %v354
      %v471 = vunpack.c.l.b16 %v355
      %v472 = vunpack.c.h.b16 %v355
      %v473 = vunpack.c.l.b16 %v356
      %v474 = vunpack.c.h.b16 %v356
      %v475 = vunpack.c.l.b16 %v357
      %v476 = vunpack.c.h.b16 %v357
      %v477 = vunpack.c.l.b16 %v358
      %v478 = vunpack.c.h.b16 %v358
      %v479 = vunpack.c.l.b16 %v359
      %v480 = vunpack.c.h.b16 %v359
      %v481 = vunpack.c.l.b16 %v360
      %v482 = vunpack.c.h.b16 %v360
      %v483 = vunpack.c.l.b16 %v361
      %v484 = vunpack.c.h.b16 %v361
      %v485 = vunpack.c.l.b16 %v362
      %v486 = vunpack.c.h.b16 %v362
      %v487 = vunpack.c.l.b16 %v363
      %v488 = vunpack.c.h.b16 %v363
      %v489 = vunpack.c.l.b16 %v364
      %v490 = vunpack.c.h.b16 %v364
      %v491 = vunpack.c.l.b16 %v365
      %v492 = vunpack.c.h.b16 %v365
      %v493 = vunpack.c.l.b16 %v366
      %v494 = vunpack.c.h.b16 %v366
      %v495 = vpack.c.b16 %v433, %v431
      %v496 = vpack.c.b16 %v434, %v432
      %v497 = vpack.c.b16 %v437, %v435
      %v498 = vpack.c.b16 %v438, %v436
      %v499 = vpack.c.b16 %v441, %v439
      %v500 = vpack.c.b16 %v442, %v440
      %v501 = vpack.c.b16 %v445, %v443
      %v502 = vpack.c.b16 %v446, %v444
      %v503 = vpack.c.b16 %v449, %v447
      %v504 = vpack.c.b16 %v450, %v448
      %v505 = vpack.c.b16 %v453, %v451
      %v506 = vpack.c.b16 %v454, %v452
      %v507 = vpack.c.b16 %v457, %v455
      %v508 = vpack.c.b16 %v458, %v456
      %v509 = vpack.c.b16 %v461, %v459
      %v510 = vpack.c.b16 %v462, %v460
      %v511 = vpack.c.b16 %v465, %v463
      %v512 = vpack.c.b16 %v466, %v464
      %v513 = vpack.c.b16 %v469, %v467
      %v514 = vpack.c.b16 %v470, %v468
      %v515 = vpack.c.b16 %v473, %v471
      %v516 = vpack.c.b16 %v474, %v472
      %v517 = vpack.c.b16 %v477, %v475
      %v518 = vpack.c.b16 %v478, %v476
      %v519 = vpack.c.b16 %v481, %v479
      %v520 = vpack.c.b16 %v482, %v480
      %v521 = vpack.c.b16 %v485, %v483
      %v522 = vpack.c.b16 %v486, %v484
      %v523 = vpack.c.b16 %v489, %v487
      %v524 = vpack.c.b16 %v490, %v488
      %v525 = vpack.c.b16 %v493, %v491
      %v526 = vpack.c.b16 %v494, %v492
      %v591 = vunpack.c.l.b16 %v367
      %v592 = vunpack.c.l.b16 %v368
      %v593 = vunpack.c.l.b16 %v369
      %v594 = vunpack.c.l.b16 %v370
      %v595 = vunpack.c.l.b16 %v371
      %v596 = vunpack.c.l.b16 %v372
      %v597 = vunpack.c.l.b16 %v373
      %v598 = vunpack.c.l.b16 %v374
      %v599 = vunpack.c.l.b16 %v375
      %v600 = vunpack.c.l.b16 %v376
      %v601 = vunpack.c.l.b16 %v377
      %v602 = vunpack.c.l.b16 %v378
      %v603 = vunpack.c.l.b16 %v379
      %v604 = vunpack.c.l.b16 %v380
      %v605 = vunpack.c.l.b16 %v381
      %v606 = vunpack.c.l.b16 %v382
      %v607 = vunpack.c.l.b16 %v383
      %v608 = vunpack.c.l.b16 %v384
      %v609 = vunpack.c.l.b16 %v385
      %v610 = vunpack.c.l.b16 %v386
      %v611 = vunpack.c.l.b16 %v387
      %v612 = vunpack.c.l.b16 %v388
      %v613 = vunpack.c.l.b16 %v389
      %v614 = vunpack.c.l.b16 %v390
      %v615 = vunpack.c.l.b16 %v391
      %v616 = vunpack.c.l.b16 %v392
      %v617 = vunpack.c.l.b16 %v393
      %v618 = vunpack.c.l.b16 %v394
      %v619 = vunpack.c.l.b16 %v395
      %v620 = vunpack.c.l.b16 %v396
      %v621 = vunpack.c.l.b16 %v397
      %v622 = vunpack.c.l.b16 %v398
      %v623 = vpack.c.b16 %v592, %v591
      %v624 = vpack.c.b16 %v594, %v593
      %v625 = vpack.c.b16 %v596, %v595
      %v626 = vpack.c.b16 %v598, %v597
      %v627 = vpack.c.b16 %v600, %v599
      %v628 = vpack.c.b16 %v602, %v601
      %v629 = vpack.c.b16 %v604, %v603
      %v630 = vpack.c.b16 %v606, %v605
      %v631 = vpack.c.b16 %v608, %v607
      %v632 = vpack.c.b16 %v610, %v609
      %v633 = vpack.c.b16 %v612, %v611
      %v634 = vpack.c.b16 %v614, %v613
      %v635 = vpack.c.b16 %v616, %v615
      %v636 = vpack.c.b16 %v618, %v617
      %v637 = vpack.c.b16 %v620, %v619
      %v638 = vpack.c.b16 %v622, %v621
      %655 = vmatpush.bf16.msra.mxu0 %v630
      %656 = vmatpush.bf16.msra.mxu0 %v629
      %657 = vmatpush.bf16.msra.mxu0 %v628
      %658 = vmatpush.bf16.msra.mxu0 %v627
      %659 = vmatpush.bf16.msra.mxu0 %v626
      %660 = vmatpush.bf16.msra.mxu0 %v625
      %661 = vmatpush.bf16.msra.mxu0 %v624
      %662 = vmatpush.bf16.msra.mxu0 %v623
      %663 = vmatmul.bf16.gmra.mxu0 %v495
      %v664 = vpop.f32.mrf.mxu0
      %v665 = vadd.f32 0.0, %v664
      %v666 = vpop.f32.mrf.mxu0
      %v667 = vadd.f32 0.0, %v666
      %668 = vmatmul.bf16.gmra.mxu0 %v497
      %v669 = vpop.f32.mrf.mxu0
      %v670 = vadd.f32 0.0, %v669
      %v671 = vpop.f32.mrf.mxu0
      %v672 = vadd.f32 0.0, %v671
      %673 = vmatmul.bf16.gmra.mxu0 %v499
      %v674 = vpop.f32.mrf.mxu0
      %v675 = vadd.f32 0.0, %v674
      %v676 = vpop.f32.mrf.mxu0
      %v677 = vadd.f32 0.0, %v676
      %678 = vmatmul.bf16.gmra.mxu0 %v501
      %v679 = vpop.f32.mrf.mxu0
      %v680 = vadd.f32 0.0, %v679
      %v681 = vpop.f32.mrf.mxu0
      %v682 = vadd.f32 0.0, %v681
      %683 = vmatmul.bf16.gmra.mxu0 %v503
      %v684 = vpop.f32.mrf.mxu0
      %v685 = vadd.f32 0.0, %v684
      %v686 = vpop.f32.mrf.mxu0
      %v687 = vadd.f32 0.0, %v686
      %688 = vmatmul.bf16.gmra.mxu0 %v505
      %v689 = vpop.f32.mrf.mxu0
      %v690 = vadd.f32 0.0, %v689
      %v691 = vpop.f32.mrf.mxu0
      %v692 = vadd.f32 0.0, %v691
      %693 = vmatmul.bf16.gmra.mxu0 %v507
      %v694 = vpop.f32.mrf.mxu0
      %v695 = vadd.f32 0.0, %v694
      %v696 = vpop.f32.mrf.mxu0
      %v697 = vadd.f32 0.0, %v696
      %698 = vmatmul.bf16.gmra.mxu0 %v509
      %v699 = vpop.f32.mrf.mxu0
      %v700 = vadd.f32 0.0, %v699
      %v701 = vpop.f32.mrf.mxu0
      %v702 = vadd.f32 0.0, %v701
      %703 = vmatmul.bf16.gmra.mxu0 %v511
      %v704 = vpop.f32.mrf.mxu0
      %v705 = vadd.f32 0.0, %v704
      %v706 = vpop.f32.mrf.mxu0
      %v707 = vadd.f32 0.0, %v706
      %708 = vmatmul.bf16.gmra.mxu0 %v513
      %v709 = vpop.f32.mrf.mxu0
      %v710 = vadd.f32 0.0, %v709
      %v711 = vpop.f32.mrf.mxu0
      %v712 = vadd.f32 0.0, %v711
      %713 = vmatmul.bf16.gmra.mxu0 %v515
      %v714 = vpop.f32.mrf.mxu0
      %v715 = vadd.f32 0.0, %v714
      %v716 = vpop.f32.mrf.mxu0
      %v717 = vadd.f32 0.0, %v716
      %718 = vmatmul.bf16.gmra.mxu0 %v517
      %v719 = vpop.f32.mrf.mxu0
      %v720 = vadd.f32 0.0, %v719
      %v721 = vpop.f32.mrf.mxu0
      %v722 = vadd.f32 0.0, %v721
      %723 = vmatmul.bf16.gmra.mxu0 %v519
      %v724 = vpop.f32.mrf.mxu0
      %v725 = vadd.f32 0.0, %v724
      %v726 = vpop.f32.mrf.mxu0
      %v727 = vadd.f32 0.0, %v726
      %728 = vmatmul.bf16.gmra.mxu0 %v521
      %v729 = vpop.f32.mrf.mxu0
      %v730 = vadd.f32 0.0, %v729
      %v731 = vpop.f32.mrf.mxu0
      %v732 = vadd.f32 0.0, %v731
      %733 = vmatmul.bf16.gmra.mxu0 %v523
      %v734 = vpop.f32.mrf.mxu0
      %v735 = vadd.f32 0.0, %v734
      %v736 = vpop.f32.mrf.mxu0
      %v737 = vadd.f32 0.0, %v736
      %738 = vmatmul.bf16.gmra.mxu0 %v525
      %v739 = vpop.f32.mrf.mxu0
      %v740 = vadd.f32 0.0, %v739
      %v741 = vpop.f32.mrf.mxu0
      %v742 = vadd.f32 0.0, %v741
      %743 = vdwg.mxu0
      %744 = vmatpush.bf16.msra.mxu0 %v638
      %745 = vmatpush.bf16.msra.mxu0 %v637
      %746 = vmatpush.bf16.msra.mxu0 %v636
      %747 = vmatpush.bf16.msra.mxu0 %v635
      %748 = vmatpush.bf16.msra.mxu0 %v634
      %749 = vmatpush.bf16.msra.mxu0 %v633
      %750 = vmatpush.bf16.msra.mxu0 %v632
      %751 = vmatpush.bf16.msra.mxu0 %v631
      %752 = vmatmul.bf16.gmra.mxu0 %v496
      %v753 = vpop.f32.mrf.mxu0
      %v754 = vadd.f32 %v665, %v753
      %v755 = vpop.f32.mrf.mxu0
      %v756 = vadd.f32 %v667, %v755
      %757 = vmatmul.bf16.gmra.mxu0 %v498
      %v758 = vpop.f32.mrf.mxu0
      %v759 = vadd.f32 %v670, %v758
      %v760 = vpop.f32.mrf.mxu0
      %v761 = vadd.f32 %v672, %v760
      %762 = vmatmul.bf16.gmra.mxu0 %v500
      %v763 = vpop.f32.mrf.mxu0
      %v764 = vadd.f32 %v675, %v763
      %v765 = vpop.f32.mrf.mxu0
      %v766 = vadd.f32 %v677, %v765
      %767 = vmatmul.bf16.gmra.mxu0 %v502
      %v768 = vpop.f32.mrf.mxu0
      %v769 = vadd.f32 %v680, %v768
      %v770 = vpop.f32.mrf.mxu0
      %v771 = vadd.f32 %v682, %v770
      %772 = vmatmul.bf16.gmra.mxu0 %v504
      %v773 = vpop.f32.mrf.mxu0
      %v774 = vadd.f32 %v685, %v773
      %v775 = vpop.f32.mrf.mxu0
      %v776 = vadd.f32 %v687, %v775
      %777 = vmatmul.bf16.gmra.mxu0 %v506
      %v778 = vpop.f32.mrf.mxu0
      %v779 = vadd.f32 %v690, %v778
      %v780 = vpop.f32.mrf.mxu0
      %v781 = vadd.f32 %v692, %v780
      %782 = vmatmul.bf16.gmra.mxu0 %v508
      %v783 = vpop.f32.mrf.mxu0
      %v784 = vadd.f32 %v695, %v783
      %v785 = vpop.f32.mrf.mxu0
      %v786 = vadd.f32 %v697, %v785
      %787 = vmatmul.bf16.gmra.mxu0 %v510
      %v788 = vpop.f32.mrf.mxu0
      %v789 = vadd.f32 %v700, %v788
      %v790 = vpop.f32.mrf.mxu0
      %v791 = vadd.f32 %v702, %v790
      %792 = vmatmul.bf16.gmra.mxu0 %v512
      %v793 = vpop.f32.mrf.mxu0
      %v794 = vadd.f32 %v705, %v793
      %v795 = vpop.f32.mrf.mxu0
      %v796 = vadd.f32 %v707, %v795
      %797 = vmatmul.bf16.gmra.mxu0 %v514
      %v798 = vpop.f32.mrf.mxu0
      %v799 = vadd.f32 %v710, %v798
      %v800 = vpop.f32.mrf.mxu0
      %v801 = vadd.f32 %v712, %v800
      %802 = vmatmul.bf16.gmra.mxu0 %v516
      %v803 = vpop.f32.mrf.mxu0
      %v804 = vadd.f32 %v715, %v803
      %v805 = vpop.f32.mrf.mxu0
      %v806 = vadd.f32 %v717, %v805
      %807 = vmatmul.bf16.gmra.mxu0 %v518
      %v808 = vpop.f32.mrf.mxu0
      %v809 = vadd.f32 %v720, %v808
      %v810 = vpop.f32.mrf.mxu0
      %v811 = vadd.f32 %v722, %v810
      %812 = vmatmul.bf16.gmra.mxu0 %v520
      %v813 = vpop.f32.mrf.mxu0
      %v814 = vadd.f32 %v725, %v813
      %v815 = vpop.f32.mrf.mxu0
      %v816 = vadd.f32 %v727, %v815
      %817 = vmatmul.bf16.gmra.mxu0 %v522
      %v818 = vpop.f32.mrf.mxu0
      %v819 = vadd.f32 %v730, %v818
      %v820 = vpop.f32.mrf.mxu0
      %v821 = vadd.f32 %v732, %v820
      %822 = vmatmul.bf16.gmra.mxu0 %v524
      %v823 = vpop.f32.mrf.mxu0
      %v824 = vadd.f32 %v735, %v823
      %v825 = vpop.f32.mrf.mxu0
      %v826 = vadd.f32 %v737, %v825
      %827 = vmatmul.bf16.gmra.mxu0 %v526
      %v828 = vpop.f32.mrf.mxu0
      %v829 = vadd.f32 %v740, %v828
      %v830 = vpop.f32.mrf.mxu0
      %v831 = vadd.f32 %v742, %v830
      %832 = vdwg.mxu0
      %v833 = vadd.f32 %v303, %v754
      %v834 = vadd.f32 %v304, %v756
      %v835 = vadd.f32 %v305, %v759
      %v836 = vadd.f32 %v306, %v761
      %v837 = vadd.f32 %v307, %v764
      %v838 = vadd.f32 %v308, %v766
      %v839 = vadd.f32 %v309, %v769
      %v840 = vadd.f32 %v310, %v771
      %v841 = vadd.f32 %v311, %v774
      %v842 = vadd.f32 %v312, %v776
      %v843 = vadd.f32 %v313, %v779
      %v844 = vadd.f32 %v314, %v781
      %v845 = vadd.f32 %v315, %v784
      %v846 = vadd.f32 %v316, %v786
      %v847 = vadd.f32 %v317, %v789
      %v848 = vadd.f32 %v318, %v791
      %v849 = vadd.f32 %v319, %v794
      %v850 = vadd.f32 %v320, %v796
      %v851 = vadd.f32 %v321, %v799
      %v852 = vadd.f32 %v322, %v801
      %v853 = vadd.f32 %v323, %v804
      %v854 = vadd.f32 %v324, %v806
      %v855 = vadd.f32 %v325, %v809
      %v856 = vadd.f32 %v326, %v811
      %v857 = vadd.f32 %v327, %v814
      %v858 = vadd.f32 %v328, %v816
      %v859 = vadd.f32 %v329, %v819
      %v860 = vadd.f32 %v330, %v821
      %v861 = vadd.f32 %v331, %v824
      %v862 = vadd.f32 %v332, %v826
      %v863 = vadd.f32 %v333, %v829
      %v864 = vadd.f32 %v334, %v831
      %865 = vst [vmem:[#allocation2] sm:$0xff] %v833
      %866 = vst [vmem:[#allocation2 + $0x8] sm:$0xff] %v834
      %867 = vst [vmem:[#allocation2 + $0x10] sm:$0xff] %v835
      %868 = vst [vmem:[#allocation2 + $0x18] sm:$0xff] %v836
      %869 = vst [vmem:[#allocation2 + $0x20] sm:$0xff] %v837
      %870 = vst [vmem:[#allocation2 + $0x28] sm:$0xff] %v838
      %871 = vst [vmem:[#allocation2 + $0x30] sm:$0xff] %v839
      %872 = vst [vmem:[#allocation2 + $0x38] sm:$0xff] %v840
      %873 = vst [vmem:[#allocation2 + $0x40] sm:$0xff] %v841
      %874 = vst [vmem:[#allocation2 + $0x48] sm:$0xff] %v842
      %875 = vst [vmem:[#allocation2 + $0x50] sm:$0xff] %v843
      %876 = vst [vmem:[#allocation2 + $0x58] sm:$0xff] %v844
      %877 = vst [vmem:[#allocation2 + $0x60] sm:$0xff] %v845
      %878 = vst [vmem:[#allocation2 + $0x68] sm:$0xff] %v846
      %879 = vst [vmem:[#allocation2 + $0x70] sm:$0xff] %v847
      %880 = vst [vmem:[#allocation2 + $0x78] sm:$0xff] %v848
      %881 = vst [vmem:[#allocation2 + $0x80] sm:$0xff] %v849
      %882 = vst [vmem:[#allocation2 + $0x88] sm:$0xff] %v850
      %883 = vst [vmem:[#allocation2 + $0x90] sm:$0xff] %v851
      %884 = vst [vmem:[#allocation2 + $0x98] sm:$0xff] %v852
      %885 = vst [vmem:[#allocation2 + $0xa0] sm:$0xff] %v853
      %886 = vst [vmem:[#allocation2 + $0xa8] sm:$0xff] %v854
      %887 = vst [vmem:[#allocation2 + $0xb0] sm:$0xff] %v855
      %888 = vst [vmem:[#allocation2 + $0xb8] sm:$0xff] %v856
      %889 = vst [vmem:[#allocation2 + $0xc0] sm:$0xff] %v857
      %890 = vst [vmem:[#allocation2 + $0xc8] sm:$0xff] %v858
      %891 = vst [vmem:[#allocation2 + $0xd0] sm:$0xff] %v859
      %892 = vst [vmem:[#allocation2 + $0xd8] sm:$0xff] %v860
      %893 = vst [vmem:[#allocation2 + $0xe0] sm:$0xff] %v861
      %894 = vst [vmem:[#allocation2 + $0xe8] sm:$0xff] %v862
      %895 = vst [vmem:[#allocation2 + $0xf0] sm:$0xff] %v863
      %896 = vst [vmem:[#allocation2 + $0xf8] sm:$0xff] %v864
      // Predicated region
      $region37: #{fused_matmul.1} parent=31 // pred_check
        %p897 = pneg %p267
      $region38: #{fused_matmul.1} parent=31 // pred_check_branch
        %899 = sbr.rel (%p897) target = $region40
      $region39: #{fused_matmul.1} parent=31 // pred_region
        %v900 = vld [vmem:[#allocation2] sm:$0xff]
        %v901 = vld [vmem:[#allocation2 + $0x8] sm:$0xff]
        %v902 = vld [vmem:[#allocation2 + $0x10] sm:$0xff]
        %v903 = vld [vmem:[#allocation2 + $0x18] sm:$0xff]
        %v904 = vld [vmem:[#allocation2 + $0x20] sm:$0xff]
        %v905 = vld [vmem:[#allocation2 + $0x28] sm:$0xff]
        %v906 = vld [vmem:[#allocation2 + $0x30] sm:$0xff]
        %v907 = vld [vmem:[#allocation2 + $0x38] sm:$0xff]
        %v908 = vld [vmem:[#allocation2 + $0x40] sm:$0xff]
        %v909 = vld [vmem:[#allocation2 + $0x48] sm:$0xff]
        %v910 = vld [vmem:[#allocation2 + $0x50] sm:$0xff]
        %v911 = vld [vmem:[#allocation2 + $0x58] sm:$0xff]
        %v912 = vld [vmem:[#allocation2 + $0x60] sm:$0xff]
        %v913 = vld [vmem:[#allocation2 + $0x68] sm:$0xff]
        %v914 = vld [vmem:[#allocation2 + $0x70] sm:$0xff]
        %v915 = vld [vmem:[#allocation2 + $0x78] sm:$0xff]
        %v916 = vld [vmem:[#allocation2 + $0x80] sm:$0xff]
        %v917 = vld [vmem:[#allocation2 + $0x88] sm:$0xff]
        %v918 = vld [vmem:[#allocation2 + $0x90] sm:$0xff]
        %v919 = vld [vmem:[#allocation2 + $0x98] sm:$0xff]
        %v920 = vld [vmem:[#allocation2 + $0xa0] sm:$0xff]
        %v921 = vld [vmem:[#allocation2 + $0xa8] sm:$0xff]
        %v922 = vld [vmem:[#allocation2 + $0xb0] sm:$0xff]
        %v923 = vld [vmem:[#allocation2 + $0xb8] sm:$0xff]
        %v924 = vld [vmem:[#allocation2 + $0xc0] sm:$0xff]
        %v925 = vld [vmem:[#allocation2 + $0xc8] sm:$0xff]
        %v926 = vld [vmem:[#allocation2 + $0xd0] sm:$0xff]
        %v927 = vld [vmem:[#allocation2 + $0xd8] sm:$0xff]
        %v928 = vld [vmem:[#allocation2 + $0xe0] sm:$0xff]
        %v929 = vld [vmem:[#allocation2 + $0xe8] sm:$0xff]
        %v930 = vld [vmem:[#allocation2 + $0xf0] sm:$0xff]
        %v931 = vld [vmem:[#allocation2 + $0xf8] sm:$0xff]
        %v932 = vld [vmem:[%s257] sm:$0x1]
        %v934 = vperm.slane %v932, 0
        %v936 = vadd.f32 %v900, %v934
        %v937 = vadd.f32 %v901, %v934
        %v938 = vadd.f32 %v902, %v934
        %v939 = vadd.f32 %v903, %v934
        %v940 = vadd.f32 %v904, %v934
        %v941 = vadd.f32 %v905, %v934
        %v942 = vadd.f32 %v906, %v934
        %v943 = vadd.f32 %v907, %v934
        %v944 = vadd.f32 %v908, %v934
        %v945 = vadd.f32 %v909, %v934
        %v946 = vadd.f32 %v910, %v934
        %v947 = vadd.f32 %v911, %v934
        %v948 = vadd.f32 %v912, %v934
        %v949 = vadd.f32 %v913, %v934
        %v950 = vadd.f32 %v914, %v934
        %v951 = vadd.f32 %v915, %v934
        %v952 = vadd.f32 %v916, %v934
        %v953 = vadd.f32 %v917, %v934
        %v954 = vadd.f32 %v918, %v934
        %v955 = vadd.f32 %v919, %v934
        %v956 = vadd.f32 %v920, %v934
        %v957 = vadd.f32 %v921, %v934
        %v958 = vadd.f32 %v922, %v934
        %v959 = vadd.f32 %v923, %v934
        %v960 = vadd.f32 %v924, %v934
        %v961 = vadd.f32 %v925, %v934
        %v962 = vadd.f32 %v926, %v934
        %v963 = vadd.f32 %v927, %v934
        %v964 = vadd.f32 %v928, %v934
        %v965 = vadd.f32 %v929, %v934
        %v966 = vadd.f32 %v930, %v934
        %v967 = vadd.f32 %v931, %v934
        %v968 = vmax.f32 %v936, 0.0
        %v969 = vmax.f32 %v937, 0.0
        %v970 = vmax.f32 %v938, 0.0
        %v971 = vmax.f32 %v939, 0.0
        %v972 = vmax.f32 %v940, 0.0
        %v973 = vmax.f32 %v941, 0.0
        %v974 = vmax.f32 %v942, 0.0
        %v975 = vmax.f32 %v943, 0.0
        %v976 = vmax.f32 %v944, 0.0
        %v977 = vmax.f32 %v945, 0.0
        %v978 = vmax.f32 %v946, 0.0
        %v979 = vmax.f32 %v947, 0.0
        %v980 = vmax.f32 %v948, 0.0
        %v981 = vmax.f32 %v949, 0.0
        %v982 = vmax.f32 %v950, 0.0
        %v983 = vmax.f32 %v951, 0.0
        %v984 = vmax.f32 %v952, 0.0
        %v985 = vmax.f32 %v953, 0.0
        %v986 = vmax.f32 %v954, 0.0
        %v987 = vmax.f32 %v955, 0.0
        %v988 = vmax.f32 %v956, 0.0
        %v989 = vmax.f32 %v957, 0.0
        %v990 = vmax.f32 %v958, 0.0
        %v991 = vmax.f32 %v959, 0.0
        %v992 = vmax.f32 %v960, 0.0
        %v993 = vmax.f32 %v961, 0.0
        %v994 = vmax.f32 %v962, 0.0
        %v995 = vmax.f32 %v963, 0.0
        %v996 = vmax.f32 %v964, 0.0
        %v997 = vmax.f32 %v965, 0.0
        %v998 = vmax.f32 %v966, 0.0
        %v999 = vmax.f32 %v967, 0.0
        %1000 = vst [vmem:[%s265] sm:$0xff] %v968
        %1001 = vst [vmem:[%s265 + $0x8] sm:$0xff] %v969
        %1002 = vst [vmem:[%s265 + $0x10] sm:$0xff] %v970
        %1003 = vst [vmem:[%s265 + $0x18] sm:$0xff] %v971
        %1004 = vst [vmem:[%s265 + $0x20] sm:$0xff] %v972
        %1005 = vst [vmem:[%s265 + $0x28] sm:$0xff] %v973
        %1006 = vst [vmem:[%s265 + $0x30] sm:$0xff] %v974
        %1007 = vst [vmem:[%s265 + $0x38] sm:$0xff] %v975
        %1008 = vst [vmem:[%s265 + $0x40] sm:$0xff] %v976
        %1009 = vst [vmem:[%s265 + $0x48] sm:$0xff] %v977
        %1010 = vst [vmem:[%s265 + $0x50] sm:$0xff] %v978
        %1011 = vst [vmem:[%s265 + $0x58] sm:$0xff] %v979
        %1012 = vst [vmem:[%s265 + $0x60] sm:$0xff] %v980
        %1013 = vst [vmem:[%s265 + $0x68] sm:$0xff] %v981
        %1014 = vst [vmem:[%s265 + $0x70] sm:$0xff] %v982
        %1015 = vst [vmem:[%s265 + $0x78] sm:$0xff] %v983
        %1016 = vst [vmem:[%s265 + $0x80] sm:$0xff] %v984
        %1017 = vst [vmem:[%s265 + $0x88] sm:$0xff] %v985
        %1018 = vst [vmem:[%s265 + $0x90] sm:$0xff] %v986
        %1019 = vst [vmem:[%s265 + $0x98] sm:$0xff] %v987
        %1020 = vst [vmem:[%s265 + $0xa0] sm:$0xff] %v988
        %1021 = vst [vmem:[%s265 + $0xa8] sm:$0xff] %v989
        %1022 = vst [vmem:[%s265 + $0xb0] sm:$0xff] %v990
        %1023 = vst [vmem:[%s265 + $0xb8] sm:$0xff] %v991
        %1024 = vst [vmem:[%s265 + $0xc0] sm:$0xff] %v992
        %1025 = vst [vmem:[%s265 + $0xc8] sm:$0xff] %v993
        %1026 = vst [vmem:[%s265 + $0xd0] sm:$0xff] %v994
        %1027 = vst [vmem:[%s265 + $0xd8] sm:$0xff] %v995
        %1028 = vst [vmem:[%s265 + $0xe0] sm:$0xff] %v996
        %1029 = vst [vmem:[%s265 + $0xe8] sm:$0xff] %v997
        %1030 = vst [vmem:[%s265 + $0xf0] sm:$0xff] %v998
        %1031 = vst [vmem:[%s265 + $0xf8] sm:$0xff] %v999
      $region40: #{fused_matmul.1} parent=31 // pred_fallthru
        _
      %s1032 = smul.u32 32, %s19
      %p1033 = scmp.lt.s32.totalorder %s1032, 255
      %s1034 = scalar_select %p1033, %s1032, 255
      %p1035 = scmp.lt.s32.totalorder %s20, 0
      %s1036 = scalar_select %p1035, %s20, 0
      %s1037 = sadd.s32 %s1036, %s1034
      %s1038 = smul.addr %s1037, 8
      %s1039 = scalar_lea.vmem %s3, %s1038
      // Predicated region
      $region41: #{fused_matmul.1} parent=31 // pred_check
        %p1040 = pneg %p135
      $region42: #{fused_matmul.1} parent=31 // pred_check_branch
        %1042 = sbr.rel (%p1040) target = $region44
      $region43: #{fused_matmul.1} parent=31 // pred_region
        %s1043 = smul.u32 32, %s19
      $region44: #{fused_matmul.1} parent=31 // pred_fallthru
        _
    $region32: #{fused_matmul.1} parent=5 // pred_fallthru
      _
    %p1044 = scmp.le.s32.totalorder 2, %s9
    // Predicated region
    $region45: #{fused_matmul.1} parent=5 // pred_check
      %p1045 = pneg %p1044
    $region46: #{fused_matmul.1} parent=5 // pred_check_branch
      %1047 = sbr.rel (%p1045) target = $region48
    $region47: #{fused_matmul.1} parent=5 // pred_region
      %s1048 = ssub.s32 %s9, 2
      // Predicated region
      $region49: #{fused_matmul.1} parent=47 // pred_check
        %p1049 = pneg %p141
      $region50: #{fused_matmul.1} parent=47 // pred_check_branch
        %1051 = sbr.rel (%p1049) target = $region52
      $region51: #{fused_matmul.1} parent=47 // pred_region
        %s1052 = smul.u32 32, %s22
        %p1053 = scmp.lt.s32.totalorder %s1052, 255
        %s1054 = scalar_select %p1053, %s1052, 255
        %p1055 = scmp.lt.s32.totalorder %s23, 0
        %s1056 = scalar_select %p1055, %s23, 0
        %s1057 = sadd.s32 %s1056, %s1054
        %s1058 = smul.addr %s1057, 8
        %s1059 = scalar_lea.vmem %s3, %s1058
      $region52: #{fused_matmul.1} parent=47 // pred_fallthru
        _
    $region48: #{fused_matmul.1} parent=5 // pred_fallthru
      _
  $region6: #{fused_matmul.1} parent=0 // loop_footer
    %s13 = sadd.s32 1, %s9
  $region7: #{fused_matmul.1} parent=0 // loop_footer_branch
    %8 = sbr.rel target = $region3
  $region8: #{fused_matmul.1} parent=0 // loop_exit
    _

</llo_original>
